<compile_context>
chip_gen: v7x
topology: tpu7x:2x2x1
jax: 0.10.0
libtpu: 0.0.40
codegen_flags: <defaults>
</compile_context>

<pallas_src>
import functools
import math

import jax
import jax.numpy as jnp
import numpy as np
from jax.experimental import pallas as pl
from jax.experimental.pallas import tpu as pltpu

LEVELS = (1, 2, 4)
BN_EPS = 1e-5


def _round_up(x, m):
    return ((x + m - 1) // m) * m


def _pooling_matrix(H, W, levels):
    """P[H*W, num_bins]; column n holds 1/area over the module's n-th pooling
    region (mirrors the PyTorch module's ceil/floor/clamped bin arithmetic)."""
    num_bins = sum(l * l for l in levels)
    P = np.zeros((H * W, num_bins), np.float32)
    n = 0
    for level in levels:
        kh = int(math.ceil(H / level))
        kw = int(math.ceil(W / level))
        sh = int(math.floor(H / level))
        sw = int(math.floor(W / level))
        for i in range(level):
            for j in range(level):
                start_h = min(i * sh, H - kh)
                start_w = min(j * sw, W - kw)
                end_h = min(start_h + kh, H)
                end_w = min(start_w + kw, W)
                area = float((end_h - start_h) * (end_w - start_w))
                mask = np.zeros((H, W), np.float32)
                mask[start_h:end_h, start_w:end_w] = 1.0 / area
                P[:, n] = mask.reshape(-1)
                n += 1
    return P


def make_gcp_params(conv_weight, gamma, beta, running_mean, running_var,
                    in_features, height, width, levels=LEVELS, eps=BN_EPS,
                    compute_dtype=jnp.bfloat16):
    """Host-side fold, done ONCE per weight set (hoisted off the forward path).

    conv_weight: [O, num_bins*C] (1x1 conv weight squeezed; input-channel index
    = bin*C + c, i.e. the torch.cat(dim=1) ordering of the original module).
    Returns (p_pad [HWp, NBp], w2_pad [Cp, NBp, Op], bias_pad [1, Op])."""
    C, H, W = in_features, height, width
    O, K_in = conv_weight.shape
    nb = sum(l * l for l in levels)
    assert K_in == C * nb

    # BatchNorm (eval) folded into scale / shift.
    scale = gamma.astype(jnp.float32) * jax.lax.rsqrt(
        running_var.astype(jnp.float32) + eps)                        # [O]
    bias = beta.astype(jnp.float32) - running_mean.astype(jnp.float32) * scale

    # Reorder conv weight to [C, nb, O] and fold in the BN scale.
    Wr = conv_weight.astype(jnp.float32).reshape(O, nb, C)            # [O, nb, C]
    W2 = jnp.transpose(Wr, (2, 1, 0)) * scale[None, None, :]          # [C, nb, O]

    P = _pooling_matrix(H, W, levels)                                 # [H*W, nb]

    # Pad to lane-/MXU-friendly shapes (done once, not per call).
    HWp = _round_up(H * W, 128)
    NBp = _round_up(nb, 128)
    TC = C if C <= 8 else 8
    Cp = _round_up(C, TC)
    TN = min(512, _round_up(O, 128))
    Op = _round_up(O, TN)

    p_pad = jnp.zeros((HWp, NBp), compute_dtype).at[:H * W, :nb].set(
        jnp.asarray(P).astype(compute_dtype))
    w2_pad = jnp.zeros((Cp, NBp, Op), compute_dtype).at[:C, :nb, :O].set(
        W2.astype(compute_dtype))
    bias_pad = jnp.zeros((1, Op), jnp.float32).at[0, :O].set(bias)
    return p_pad, w2_pad, bias_pad


def _gcp_kernel(x_ref, p_ref, w2_ref, b_ref, o_ref, acc_ref, *, n_chan):
    """Fused pyramid pooling + projection + BN(eval) + ReLU.

    x_ref:  [TB, TC, HWp]  compute dtype
    p_ref:  [HWp, NBp]     compute dtype (resident, single-buffered)
    w2_ref: [TC, NBp, TN]  compute dtype
    b_ref:  [1, TN]        f32
    o_ref:  [TB, TN]       f32
    acc_ref:[TB, TN]       f32 scratch accumulator (carried over the C axis)
    """
    kc = pl.program_id(2)

    @pl.when(kc == 0)
    def _init():
        acc_ref[...] = jnp.zeros_like(acc_ref)

    p = p_ref[...]
    acc = acc_ref[...]
    for c in range(n_chan):                         # static, small (<= 8)
        pooled = jnp.dot(x_ref[:, c, :], p,
                         preferred_element_type=jnp.float32)           # [TB, NBp]
        acc = acc + jnp.dot(pooled.astype(w2_ref.dtype), w2_ref[c],
                            preferred_element_type=jnp.float32)         # [TB, TN]
    acc_ref[...] = acc

    @pl.when(kc == pl.num_programs(2) - 1)
    def _finalize():
        y = acc + b_ref[...]                         # f32 epilogue (v5e-safe)
        o_ref[...] = jnp.maximum(y, 0.0).astype(o_ref.dtype)


def _vmem_limit_bytes():
    try:
        kind = jax.devices()[0].device_kind.lower()
    except Exception:
        return 32 * 1024 * 1024
    if "v7" in kind:
        return 48 * 1024 * 1024      # v7x: 64 MiB physical VMEM per TensorCore
    if "v5" in kind or "v6" in kind:
        return 80 * 1024 * 1024      # v5e / v6e: 128 MiB physical VMEM
    return 32 * 1024 * 1024


@functools.partial(jax.jit, static_argnames=("out_features",))
def gcp_forward(x, p_pad, w2_pad, bias_pad, out_features):
    """x: [B, C, H, W] -> [B, out_features, 1, 1] (f32)."""
    B, C, H, W = x.shape
    HWp, NBp = p_pad.shape
    Cp, _, Op = w2_pad.shape
    O = out_features
    compute_dtype = w2_pad.dtype
    esize = w2_pad.dtype.itemsize

    # ---- tile selection against the per-generation VMEM budget ----
    TC = Cp if Cp <= 8 else 8
    TN = min(512, Op)
    Bp8 = _round_up(B, 8)
    if Bp8 >= 16:
        # Keep >= 2 batch tiles so v7x's second TensorCore gets work.
        TB = min(256, _round_up(Bp8 // 2, 8))
    else:
        TB = Bp8
    vmem_limit = _vmem_limit_bytes()

    def footprint(tb):
        return (2 * tb * TC * HWp * esize        # x blocks (double-buffered)
                + HWp * NBp * esize              # P (single-buffered, resident)
                + 2 * TC * NBp * TN * esize      # W2 blocks
                + 2 * TN * 4                     # bias
                + 2 * tb * TN * 4                # output blocks (f32)
                + tb * TN * 4)                   # f32 accumulator scratch

    while footprint(TB) > (3 * vmem_limit) // 4 and TB > 8:
        TB = max(8, TB // 2)

    Bp = _round_up(B, TB)
    n_b, n_n, n_c = Bp // TB, Op // TN, Cp // TC

    # ---- x: reshape + cast; materialize padding only when misaligned ----
    x_r = x.reshape(B, C, H * W).astype(compute_dtype)
    pad = ((0, Bp - B), (0, Cp - C), (0, HWp - H * W))
    if any(p[1] for p in pad):
        x_r = jnp.pad(x_r, pad)

    w2_const = (n_n == 1 and n_c == 1)
    b_const = (n_n == 1)

    def spec(shape, imap, constant):
        if constant:
            return pl.BlockSpec(shape, imap, pipeline_mode=pl.Buffered(1))
        return pl.BlockSpec(shape, imap)

    out = pl.pallas_call(
        functools.partial(_gcp_kernel, n_chan=TC),
        out_shape=jax.ShapeDtypeStruct((Bp, Op), jnp.float32),
        grid_spec=pltpu.PrefetchScalarGridSpec(
            num_scalar_prefetch=0,
            grid=(n_b, n_n, n_c),
            in_specs=[
                pl.BlockSpec((TB, TC, HWp), lambda i, j, k: (i, k, 0)),
                spec((HWp, NBp), lambda i, j, k: (0, 0), True),
                spec((TC, NBp, TN), lambda i, j, k: (k, 0, j), w2_const),
                spec((1, TN), lambda i, j, k: (0, j), b_const),
            ],
            out_specs=pl.BlockSpec((TB, TN), lambda i, j, k: (i, j)),
            scratch_shapes=[pltpu.VMEM((TB, TN), jnp.float32)],
        ),
        compiler_params=pltpu.CompilerParams(
            dimension_semantics=("parallel", "parallel", "arbitrary"),
            vmem_limit_bytes=vmem_limit,
        ),
    )(x_r, p_pad, w2_pad, bias_pad)
    return out[:B, :O].reshape(B, O, 1, 1)


def _reference(x, conv_weight, gamma, beta, running_mean, running_var,
               levels=LEVELS, eps=BN_EPS):
    """Pure-JAX f32 replica of the PyTorch forward (for sanity checking)."""
    B, C, H, W = x.shape
    pooled_bins = []
    for level in levels:
        kh = int(math.ceil(H / level)); kw = int(math.ceil(W / level))
        sh = int(math.floor(H / level)); sw = int(math.floor(W / level))
        for i in range(level):
            for j in range(level):
                start_h = min(i * sh, H - kh); start_w = min(j * sw, W - kw)
                end_h = min(start_h + kh, H); end_w = min(start_w + kw, W)
                region = x[:, :, start_h:end_h, start_w:end_w]
                pooled_bins.append(jnp.mean(region, axis=(2, 3)))      # [B, C]
    pooled = jnp.concatenate(pooled_bins, axis=1)                      # [B, nb*C]
    y = pooled @ conv_weight.T
    scale = gamma * jax.lax.rsqrt(running_var + eps)
    y = y * scale + (beta - running_mean * scale)
    return jnp.maximum(y, 0.0).reshape(B, -1, 1, 1)


if __name__ == "__main__":
    # Small shapes consistent with the module: B=2, C=4, H=W=16, out_features=32.
    B, C, H, W = 2, 4, 16, 16
    out_features = 32
    num_bins = sum(l * l for l in LEVELS)       # 1 + 4 + 16 = 21

    key = jax.random.PRNGKey(0)
    kx, kw, kg, kb, km, kv = jax.random.split(key, 6)
    x = jax.random.normal(kx, (B, C, H, W), dtype=jnp.float32)

    # Conv2d(in_features*num_bins, out_features, 1, bias=False) weight [O, nb*C]
    fan_in = C * num_bins
    bound = 1.0 / math.sqrt(fan_in)
    conv_weight = jax.random.uniform(kw, (out_features, fan_in),
                                     minval=-bound, maxval=bound,
                                     dtype=jnp.float32)
    # Non-trivial BatchNorm2d (eval) statistics to exercise the BN fold.
    gamma = 0.5 + jax.random.uniform(kg, (out_features,), dtype=jnp.float32)
    beta = 0.1 * jax.random.normal(kb, (out_features,), dtype=jnp.float32)
    running_mean = 0.1 * jax.random.normal(km, (out_features,), dtype=jnp.float32)
    running_var = 0.5 + jax.random.uniform(kv, (out_features,), dtype=jnp.float32)

    # Host-side fold + padding done once per weight set (hoisted off the
    # per-call path).
    p_pad, w2_pad, bias_pad = make_gcp_params(
        conv_weight, gamma, beta, running_mean, running_var,
        in_features=C, height=H, width=W)

    out = gcp_forward(x, p_pad, w2_pad, bias_pad, out_features=out_features)
    out = jax.block_until_ready(out)
    assert out.shape == (B, out_features, 1, 1)

    ref = _reference(x, conv_weight, gamma, beta, running_mean, running_var)
    max_err = float(jnp.max(jnp.abs(out - ref)))
    assert max_err < 5e-2, f"max abs error vs reference: {max_err}"

    print("KERNEL_OK")
</pallas_src>

<mosaic_0001>
module attributes {stable_mosaic.version = 11 : i64} {
  func.func @_gcp_kernel(%arg0: i32, %arg1: i32, %arg2: i32, %arg3: memref<8x4x256xbf16, #tpu.memory_space<vmem>>, %arg4: memref<256x128xbf16, #tpu.memory_space<vmem>>, %arg5: memref<4x128x128xbf16, #tpu.memory_space<vmem>>, %arg6: memref<1x128xf32, #tpu.memory_space<vmem>>, %arg7: memref<8x128xf32, #tpu.memory_space<vmem>>, %arg8: memref<8x128xf32, #tpu.memory_space<vmem>>) attributes {dimension_semantics = [#tpu.dimension_semantics<parallel>, #tpu.dimension_semantics<parallel>, #tpu.dimension_semantics<arbitrary>], iteration_bounds = array<i64: 1, 1, 1>, scalar_prefetch = 0 : i64, scratch_operands = 1 : i64, tpu.core_type = #tpu.core_type<tc>, window_params = [{transform_indices = @transform_0, window_bounds = array<i64: 8, 4, 256>}, {pipeline_mode = #tpu.pipeline_mode<synchronous>, transform_indices = @transform_1, window_bounds = array<i64: 256, 128>}, {pipeline_mode = #tpu.pipeline_mode<synchronous>, transform_indices = @transform_2, window_bounds = array<i64: 4, 128, 128>}, {pipeline_mode = #tpu.pipeline_mode<synchronous>, transform_indices = @transform_3, window_bounds = array<i64: 1, 128>}, {transform_indices = @transform_4, window_bounds = array<i64: 8, 128>}]} {
    %c0_i32 = arith.constant 0 : i32
    %0 = arith.cmpi eq, %arg2, %c0_i32 : i32
    %1 = arith.extui %0 : i1 to i32
    %c0_i32_0 = arith.constant 0 : i32
    %2 = arith.cmpi ne, %1, %c0_i32_0 : i32
    scf.if %2 {
      %cst_36 = arith.constant 0.000000e+00 : f32
      %41 = vector.broadcast %cst_36 : f32 to vector<8x128xf32>
      %c0_37 = arith.constant 0 : index
      %c0_38 = arith.constant 0 : index
      %42 = vector.load %arg8[%c0_37, %c0_38] : memref<8x128xf32, #tpu.memory_space<vmem>>, vector<8x128xf32>
      tpu.vector_store %arg8[%c0_37, %c0_38], %41 {strides = array<i32>} : memref<8x128xf32, #tpu.memory_space<vmem>>, vector<8x128xf32>,
    } else {
    }
    %c0 = arith.constant 0 : index
    %c0_1 = arith.constant 0 : index
    %3 = vector.load %arg4[%c0, %c0_1] : memref<256x128xbf16, #tpu.memory_space<vmem>>, vector<256x128xbf16>
    %c0_2 = arith.constant 0 : index
    %c0_3 = arith.constant 0 : index
    %4 = vector.load %arg8[%c0_2, %c0_3] : memref<8x128xf32, #tpu.memory_space<vmem>>, vector<8x128xf32>
    %c0_4 = arith.constant 0 : index
    %c0_5 = arith.constant 0 : index
    %c0_6 = arith.constant 0 : index
    %5 = vector.load %arg3[%c0_4, %c0_5, %c0_6] : memref<8x4x256xbf16, #tpu.memory_space<vmem>>, vector<8x1x256xbf16>
    %6 = vector.shape_cast %5 : vector<8x1x256xbf16> to vector<8x256xbf16>
    %cst = arith.constant dense<0.000000e+00> : vector<8x128xf32>
    %7 = tpu.matmul %6, %3, %cst {dimension_numbers = #tpu.dot_dimension_numbers<[1], [0], [0], [1], [0, 0, 1, 1], [], []>} : vector<8x256xbf16>, vector<256x128xbf16>, vector<8x128xf32> -> vector<8x128xf32>
    %8 = arith.truncf %7 : vector<8x128xf32> to vector<8x128xbf16>
    %c0_7 = arith.constant 0 : index
    %c0_8 = arith.constant 0 : index
    %c0_9 = arith.constant 0 : index
    %9 = vector.load %arg5[%c0_7, %c0_8, %c0_9] : memref<4x128x128xbf16, #tpu.memory_space<vmem>>, vector<1x128x128xbf16>
    %10 = vector.shape_cast %9 : vector<1x128x128xbf16> to vector<128x128xbf16>
    %cst_10 = arith.constant dense<0.000000e+00> : vector<8x128xf32>
    %11 = tpu.matmul %8, %10, %cst_10 {dimension_numbers = #tpu.dot_dimension_numbers<[1], [0], [0], [1], [0, 0, 1, 1], [], []>} : vector<8x128xbf16>, vector<128x128xbf16>, vector<8x128xf32> -> vector<8x128xf32>
    %12 = arith.addf %4, %11 : vector<8x128xf32>
    %c0_11 = arith.constant 0 : index
    %c1 = arith.constant 1 : index
    %c0_12 = arith.constant 0 : index
    %13 = vector.load %arg3[%c0_11, %c1, %c0_12] : memref<8x4x256xbf16, #tpu.memory_space<vmem>>, vector<8x1x256xbf16>
    %14 = vector.shape_cast %13 : vector<8x1x256xbf16> to vector<8x256xbf16>
    %cst_13 = arith.constant dense<0.000000e+00> : vector<8x128xf32>
    %15 = tpu.matmul %14, %3, %cst_13 {dimension_numbers = #tpu.dot_dimension_numbers<[1], [0], [0], [1], [0, 0, 1, 1], [], []>} : vector<8x256xbf16>, vector<256x128xbf16>, vector<8x128xf32> -> vector<8x128xf32>
    %16 = arith.truncf %15 : vector<8x128xf32> to vector<8x128xbf16>
    %c1_14 = arith.constant 1 : index
    %c0_15 = arith.constant 0 : index
    %c0_16 = arith.constant 0 : index
    %17 = vector.load %arg5[%c1_14, %c0_15, %c0_16] : memref<4x128x128xbf16, #tpu.memory_space<vmem>>, vector<1x128x128xbf16>
    %18 = vector.shape_cast %17 : vector<1x128x128xbf16> to vector<128x128xbf16>
    %cst_17 = arith.constant dense<0.000000e+00> : vector<8x128xf32>
    %19 = tpu.matmul %16, %18, %cst_17 {dimension_numbers = #tpu.dot_dimension_numbers<[1], [0], [0], [1], [0, 0, 1, 1], [], []>} : vector<8x128xbf16>, vector<128x128xbf16>, vector<8x128xf32> -> vector<8x128xf32>
    %20 = arith.addf %12, %19 : vector<8x128xf32>
    %c0_18 = arith.constant 0 : index
    %c2 = arith.constant 2 : index
    %c0_19 = arith.constant 0 : index
    %21 = vector.load %arg3[%c0_18, %c2, %c0_19] : memref<8x4x256xbf16, #tpu.memory_space<vmem>>, vector<8x1x256xbf16>
    %22 = vector.shape_cast %21 : vector<8x1x256xbf16> to vector<8x256xbf16>
    %cst_20 = arith.constant dense<0.000000e+00> : vector<8x128xf32>
    %23 = tpu.matmul %22, %3, %cst_20 {dimension_numbers = #tpu.dot_dimension_numbers<[1], [0], [0], [1], [0, 0, 1, 1], [], []>} : vector<8x256xbf16>, vector<256x128xbf16>, vector<8x128xf32> -> vector<8x128xf32>
    %24 = arith.truncf %23 : vector<8x128xf32> to vector<8x128xbf16>
    %c2_21 = arith.constant 2 : index
    %c0_22 = arith.constant 0 : index
    %c0_23 = arith.constant 0 : index
    %25 = vector.load %arg5[%c2_21, %c0_22, %c0_23] : memref<4x128x128xbf16, #tpu.memory_space<vmem>>, vector<1x128x128xbf16>
    %26 = vector.shape_cast %25 : vector<1x128x128xbf16> to vector<128x128xbf16>
    %cst_24 = arith.constant dense<0.000000e+00> : vector<8x128xf32>
    %27 = tpu.matmul %24, %26, %cst_24 {dimension_numbers = #tpu.dot_dimension_numbers<[1], [0], [0], [1], [0, 0, 1, 1], [], []>} : vector<8x128xbf16>, vector<128x128xbf16>, vector<8x128xf32> -> vector<8x128xf32>
    %28 = arith.addf %20, %27 : vector<8x128xf32>
    %c0_25 = arith.constant 0 : index
    %c3 = arith.constant 3 : index
    %c0_26 = arith.constant 0 : index
    %29 = vector.load %arg3[%c0_25, %c3, %c0_26] : memref<8x4x256xbf16, #tpu.memory_space<vmem>>, vector<8x1x256xbf16>
    %30 = vector.shape_cast %29 : vector<8x1x256xbf16> to vector<8x256xbf16>
    %cst_27 = arith.constant dense<0.000000e+00> : vector<8x128xf32>
    %31 = tpu.matmul %30, %3, %cst_27 {dimension_numbers = #tpu.dot_dimension_numbers<[1], [0], [0], [1], [0, 0, 1, 1], [], []>} : vector<8x256xbf16>, vector<256x128xbf16>, vector<8x128xf32> -> vector<8x128xf32>
    %32 = arith.truncf %31 : vector<8x128xf32> to vector<8x128xbf16>
    %c3_28 = arith.constant 3 : index
    %c0_29 = arith.constant 0 : index
    %c0_30 = arith.constant 0 : index
    %33 = vector.load %arg5[%c3_28, %c0_29, %c0_30] : memref<4x128x128xbf16, #tpu.memory_space<vmem>>, vector<1x128x128xbf16>
    %34 = vector.shape_cast %33 : vector<1x128x128xbf16> to vector<128x128xbf16>
    %cst_31 = arith.constant dense<0.000000e+00> : vector<8x128xf32>
    %35 = tpu.matmul %32, %34, %cst_31 {dimension_numbers = #tpu.dot_dimension_numbers<[1], [0], [0], [1], [0, 0, 1, 1], [], []>} : vector<8x128xbf16>, vector<128x128xbf16>, vector<8x128xf32> -> vector<8x128xf32>
    %36 = arith.addf %28, %35 : vector<8x128xf32>
    %c0_32 = arith.constant 0 : index
    %c0_33 = arith.constant 0 : index
    %37 = vector.load %arg8[%c0_32, %c0_33] : memref<8x128xf32, #tpu.memory_space<vmem>>, vector<8x128xf32>
    tpu.vector_store %arg8[%c0_32, %c0_33], %36 {strides = array<i32>} : memref<8x128xf32, #tpu.memory_space<vmem>>, vector<8x128xf32>,
    %c0_i32_34 = arith.constant 0 : i32
    %38 = arith.cmpi eq, %arg2, %c0_i32_34 : i32
    %39 = arith.extui %38 : i1 to i32
    %c0_i32_35 = arith.constant 0 : i32
    %40 = arith.cmpi ne, %39, %c0_i32_35 : i32
    scf.if %40 {
      %c0_36 = arith.constant 0 : index
      %c0_37 = arith.constant 0 : index
      %41 = vector.load %arg6[%c0_36, %c0_37] : memref<1x128xf32, #tpu.memory_space<vmem>>, vector<1x128xf32>
      %42 = vector.broadcast %41 : vector<1x128xf32> to vector<8x128xf32>
      %43 = arith.addf %36, %42 : vector<8x128xf32>
      %cst_38 = arith.constant 0.000000e+00 : f32
      %44 = vector.broadcast %cst_38 : f32 to vector<8x128xf32>
      %45 = arith.maximumf %43, %44 : vector<8x128xf32>
      %c0_39 = arith.constant 0 : index
      %c0_40 = arith.constant 0 : index
      %46 = vector.load %arg7[%c0_39, %c0_40] : memref<8x128xf32, #tpu.memory_space<vmem>>, vector<8x128xf32>
      tpu.vector_store %arg7[%c0_39, %c0_40], %45 {strides = array<i32>} : memref<8x128xf32, #tpu.memory_space<vmem>>, vector<8x128xf32>,
    } else {
    }
    return
  }
  func.func @transform_0(%arg0: i32, %arg1: i32, %arg2: i32) -> (i32, i32, i32) {
    %c0_i32 = arith.constant 0 : i32
    %c0_i32_0 = arith.constant 0 : i32
    return %arg0, %arg2, %c0_i32 : i32, i32, i32
  }
  func.func @transform_1(%arg0: i32, %arg1: i32, %arg2: i32) -> (i32, i32) {
    %c0_i32 = arith.constant 0 : i32
    %c0_i32_0 = arith.constant 0 : i32
    %c0_i32_1 = arith.constant 0 : i32
    return %c0_i32, %c0_i32_0 : i32, i32
  }
  func.func @transform_2(%arg0: i32, %arg1: i32, %arg2: i32) -> (i32, i32, i32) {
    %c0_i32 = arith.constant 0 : i32
    %c0_i32_0 = arith.constant 0 : i32
    return %arg2, %c0_i32, %arg1 : i32, i32, i32
  }
  func.func @transform_3(%arg0: i32, %arg1: i32, %arg2: i32) -> (i32, i32) {
    %c0_i32 = arith.constant 0 : i32
    %c0_i32_0 = arith.constant 0 : i32
    return %c0_i32, %arg1 : i32, i32
  }
  func.func @transform_4(%arg0: i32, %arg1: i32, %arg2: i32) -> (i32, i32) {
    %c0_i32 = arith.constant 0 : i32
    return %arg0, %arg1 : i32, i32
  }
}

</mosaic_0001>

<llo_original>
// kernel: gcp_forward.1
$region0: #{gcp_forward.1}
  #allocation0 [shape = 'u32[]', space=smem, size = 0x4, offset = 0x4, fixed_abs, tag = 'smem constant byte address 0x4 - core index']
  #allocation1 [shape = 'u32[144,128]{1,0:T(1,128)}', space=vmem, size = 0x12000, scoped, tag = 'internal scratch']
  #allocation2 [shape = 'f32[8,128]{1,0:T(8,128)}', space=vmem, size = 0x1000, scoped, tag = 'scratch operand']
  %s0 = inlined_call_operand.vmem [shape: bf16[8,4,256], index: 0, kind: input, shape index: {}]
  %s1 = inlined_call_operand.hbm [shape: bf16[256,128], index: 1, kind: input, shape index: {}]
  %s2 = inlined_call_operand.vmem [shape: bf16[4,128,128], index: 2, kind: input, shape index: {}]
  %s3 = inlined_call_operand.vmem [shape: f32[1,128], index: 3, kind: input, shape index: {}]
  %s4 = inlined_call_operand.vmem [shape: f32[8,128], index: 4, kind: output, shape index: {}]
  %s5 = sld [smem:[#allocation0]]
  $region38: #{gcp_forward.1} parent=0
    _
  %s7 = ssub.s32 1, %s5
  %s8 = scalar_select 0, %s7, %s5
  $region1: #{gcp_forward.1} parent=0
    #allocation3 [shape = 'u8[65536]{0}', space=vmem, size = 0x10000, scoped, tag = 'input window, operand 1, single buffered']
    #allocation4 [shape = 's32[1]{0}', space=sflag, size = 0x4, scoped, tag = 'scoped memory for gcp_forward.1']
    %9 = vsyncpa [#allocation4], 0
    // Predicated region
    $region2: #{gcp_forward.1} parent=1 // pred_check
      _
    $region3: #{gcp_forward.1} parent=1 // pred_check_branch
      %11 = sbr.rel (0) target = $region5
    $region4: #{gcp_forward.1} parent=1 // pred_region
      _
    $region5: #{gcp_forward.1} parent=1 // pred_fallthru
      _
    // Predicated region
    $region6: #{gcp_forward.1} parent=1 // pred_check
      _
    $region7: #{gcp_forward.1} parent=1 // pred_check_branch
      %13 = sbr.rel (0) target = $region9
    $region8: #{gcp_forward.1} parent=1 // pred_region
      %s15 = ssub.s32 2048, 2048
      %16 = vsyncadd [#allocation4], %s15
      %s17 = sshll.u32 [#allocation3], 4
      %s18 = int_to_ptr.vmem [resolvable:$true] %s17
      %23 = dma.hbm_to_vmem [thread:$0]  %s1, 2048, %s18, [#allocation4], 64, 64, 4
    $region9: #{gcp_forward.1} parent=1 // pred_fallthru
      _
    // Predicated region
    $region10: #{gcp_forward.1} parent=1 // pred_check
      _
    $region11: #{gcp_forward.1} parent=1 // pred_check_branch
      %25 = sbr.rel (0) target = $region13
    $region12: #{gcp_forward.1} parent=1 // pred_region
      _
    $region13: #{gcp_forward.1} parent=1 // pred_fallthru
      _
    // Predicated region
    $region14: #{gcp_forward.1} parent=1 // pred_check
      _
    $region15: #{gcp_forward.1} parent=1 // pred_check_branch
      %27 = sbr.rel (0) target = $region17
    $region16: #{gcp_forward.1} parent=1 // pred_region
      _
    $region17: #{gcp_forward.1} parent=1 // pred_fallthru
      _
    // Predicated region
    $region18: #{gcp_forward.1} parent=1 // pred_check
      _
    $region19: #{gcp_forward.1} parent=1 // pred_check_branch
      %29 = sbr.rel (0) target = $region21
    $region20: #{gcp_forward.1} parent=1 // pred_region
      %30 = dma.done [#allocation4], 2048
    $region21: #{gcp_forward.1} parent=1 // pred_fallthru
      _
    %p32 = scmp.eq.s32.totalorder 0, 0
    // Predicated region
    $region22: #{gcp_forward.1} parent=1 // pred_check
      %p33 = pneg %p32
    $region23: #{gcp_forward.1} parent=1 // pred_check_branch
      %35 = sbr.rel (%p33) target = $region25
    $region24: #{gcp_forward.1} parent=1 // pred_region
      %36 = vst [vmem:[#allocation2] sm:$0xff] 0.0
    $region25: #{gcp_forward.1} parent=1 // pred_fallthru
      _
    %v37 = vld [vmem:[#allocation3] sm:$0xf]
    %v38 = vld [vmem:[#allocation3 + $0x4] sm:$0xf]
    %v39 = vld [vmem:[#allocation3 + $0x8] sm:$0xf]
    %v40 = vld [vmem:[#allocation3 + $0xc] sm:$0xf]
    %v41 = vld [vmem:[#allocation3 + $0x10] sm:$0xf]
    %v42 = vld [vmem:[#allocation3 + $0x14] sm:$0xf]
    %v43 = vld [vmem:[#allocation3 + $0x18] sm:$0xf]
    %v44 = vld [vmem:[#allocation3 + $0x1c] sm:$0xf]
    %v45 = vld [vmem:[#allocation3 + $0x20] sm:$0xf]
    %v46 = vld [vmem:[#allocation3 + $0x24] sm:$0xf]
    %v47 = vld [vmem:[#allocation3 + $0x28] sm:$0xf]
    %v48 = vld [vmem:[#allocation3 + $0x2c] sm:$0xf]
    %v49 = vld [vmem:[#allocation3 + $0x30] sm:$0xf]
    %v50 = vld [vmem:[#allocation3 + $0x34] sm:$0xf]
    %v51 = vld [vmem:[#allocation3 + $0x38] sm:$0xf]
    %v52 = vld [vmem:[#allocation3 + $0x3c] sm:$0xf]
    %v53 = vld [vmem:[#allocation3 + $0x40] sm:$0xf]
    %v54 = vld [vmem:[#allocation3 + $0x44] sm:$0xf]
    %v55 = vld [vmem:[#allocation3 + $0x48] sm:$0xf]
    %v56 = vld [vmem:[#allocation3 + $0x4c] sm:$0xf]
    %v57 = vld [vmem:[#allocation3 + $0x50] sm:$0xf]
    %v58 = vld [vmem:[#allocation3 + $0x54] sm:$0xf]
    %v59 = vld [vmem:[#allocation3 + $0x58] sm:$0xf]
    %v60 = vld [vmem:[#allocation3 + $0x5c] sm:$0xf]
    %v61 = vld [vmem:[#allocation3 + $0x60] sm:$0xf]
    %v62 = vld [vmem:[#allocation3 + $0x64] sm:$0xf]
    %v63 = vld [vmem:[#allocation3 + $0x68] sm:$0xf]
    %v64 = vld [vmem:[#allocation3 + $0x6c] sm:$0xf]
    %v65 = vld [vmem:[#allocation3 + $0x70] sm:$0xf]
    %v66 = vld [vmem:[#allocation3 + $0x74] sm:$0xf]
    %v67 = vld [vmem:[#allocation3 + $0x78] sm:$0xf]
    %v68 = vld [vmem:[#allocation3 + $0x7c] sm:$0xf]
    %v69 = vld [vmem:[#allocation2] sm:$0xff]
    %v70 = vld [vmem:[%s0] sm:$0x5]
    %v71 = vld [vmem:[%s0 + $0x4] sm:$0x5]
    %v72 = vld [vmem:[%s0 + $0x8] sm:$0x5]
    %v73 = vld [vmem:[%s0 + $0xc] sm:$0x5]
    %v74 = vld [vmem:[%s0 + $0x10] sm:$0x5]
    %v75 = vld [vmem:[%s0 + $0x14] sm:$0x5]
    %v76 = vld [vmem:[%s0 + $0x18] sm:$0x5]
    %v77 = vld [vmem:[%s0 + $0x1c] sm:$0x5]
    %v87 = vunpack.c.l.s4 1983009808
    %v88 = vunpack.c.0.s8 %v87
    %v89 = vlaneseq
    %v90 = vshrl.u32 %v89, 7
    %v91 = vsub.s32 %v88, %v90
    %v92 = vrot.slane %v70, %v91
    %v93 = vcombine.high %v92, %v92
    %v95 = vunpack.c.l.s4 1983009808
    %v96 = vunpack.c.0.s8 %v95
    %v97 = vlaneseq
    %v98 = vshrl.u32 %v97, 7
    %v99 = vsub.s32 %v96, %v98
    %v100 = vrot.slane %v71, %v99
    %v101 = vcombine.high %v100, %v100
    %v103 = vunpack.c.l.s4 1983009808
    %v104 = vunpack.c.0.s8 %v103
    %v105 = vlaneseq
    %v106 = vshrl.u32 %v105, 7
    %v107 = vsub.s32 %v104, %v106
    %v108 = vrot.slane %v72, %v107
    %v109 = vcombine.high %v108, %v108
    %v111 = vunpack.c.l.s4 1983009808
    %v112 = vunpack.c.0.s8 %v111
    %v113 = vlaneseq
    %v114 = vshrl.u32 %v113, 7
    %v115 = vsub.s32 %v112, %v114
    %v116 = vrot.slane %v73, %v115
    %v117 = vcombine.high %v116, %v116
    %v119 = vunpack.c.l.s4 1983009808
    %v120 = vunpack.c.0.s8 %v119
    %v121 = vlaneseq
    %v122 = vshrl.u32 %v121, 7
    %v123 = vsub.s32 %v120, %v122
    %v124 = vrot.slane %v74, %v123
    %v125 = vcombine.high %v124, %v124
    %v127 = vunpack.c.l.s4 1983009808
    %v128 = vunpack.c.0.s8 %v127
    %v129 = vlaneseq
    %v130 = vshrl.u32 %v129, 7
    %v131 = vsub.s32 %v128, %v130
    %v132 = vrot.slane %v75, %v131
    %v133 = vcombine.high %v132, %v132
    %v135 = vunpack.c.l.s4 1983009808
    %v136 = vunpack.c.0.s8 %v135
    %v137 = vlaneseq
    %v138 = vshrl.u32 %v137, 7
    %v139 = vsub.s32 %v136, %v138
    %v140 = vrot.slane %v76, %v139
    %v141 = vcombine.high %v140, %v140
    %v143 = vunpack.c.l.s4 1983009808
    %v144 = vunpack.c.0.s8 %v143
    %v145 = vlaneseq
    %v146 = vshrl.u32 %v145, 7
    %v147 = vsub.s32 %v144, %v146
    %v148 = vrot.slane %v77, %v147
    %v149 = vcombine.high %v148, %v148
    %v150 = vunpack.c.l.b16 %v92
    %v151 = vunpack.c.l.b16 %v93
    %v152 = vunpack.c.l.b16 %v100
    %v153 = vunpack.c.l.b16 %v101
    %v154 = vunpack.c.l.b16 %v108
    %v155 = vunpack.c.l.b16 %v109
    %v156 = vunpack.c.l.b16 %v116
    %v157 = vunpack.c.l.b16 %v117
    %v158 = vunpack.c.l.b16 %v124
    %v159 = vunpack.c.l.b16 %v125
    %v160 = vunpack.c.l.b16 %v132
    %v161 = vunpack.c.l.b16 %v133
    %v162 = vunpack.c.l.b16 %v140
    %v163 = vunpack.c.l.b16 %v141
    %v164 = vunpack.c.l.b16 %v148
    %v165 = vunpack.c.l.b16 %v149
    %v166 = vrot.slane %v152, 7
    %vm167 = vcmask 1041409
    %v168 = vsel %vm167, %v166, %v150
    %v169 = vrot.slane %v154, 6
    %vm170 = vcmask 1042434
    %v171 = vsel %vm170, %v169, %v168
    %v172 = vrot.slane %v156, 5
    %vm173 = vcmask 1043459
    %v174 = vsel %vm173, %v172, %v171
    %v175 = vrot.slane %v158, 4
    %vm176 = vcmask 1044484
    %v177 = vsel %vm176, %v175, %v174
    %v178 = vrot.slane %v160, 3
    %vm179 = vcmask 1045509
    %v180 = vsel %vm179, %v178, %v177
    %v181 = vrot.slane %v162, 2
    %vm182 = vcmask 1046534
    %v183 = vsel %vm182, %v181, %v180
    %v184 = vrot.slane %v164, 1
    %vm185 = vcmask 1047559
    %v186 = vsel %vm185, %v184, %v183
    %v187 = vrot.slane %v153, 7
    %v188 = vsel %vm167, %v187, %v151
    %v189 = vrot.slane %v155, 6
    %v190 = vsel %vm170, %v189, %v188
    %v191 = vrot.slane %v157, 5
    %v192 = vsel %vm173, %v191, %v190
    %v193 = vrot.slane %v159, 4
    %v194 = vsel %vm176, %v193, %v192
    %v195 = vrot.slane %v161, 3
    %v196 = vsel %vm179, %v195, %v194
    %v197 = vrot.slane %v163, 2
    %v198 = vsel %vm182, %v197, %v196
    %v199 = vrot.slane %v165, 1
    %v200 = vsel %vm185, %v199, %v198
    %v201 = vpack.c.b16 %v186, %v186
    %v202 = vpack.c.b16 %v200, %v200
    %v237 = vunpack.c.l.b16 %v37
    %v238 = vunpack.c.l.b16 %v38
    %v239 = vunpack.c.l.b16 %v39
    %v240 = vunpack.c.l.b16 %v40
    %v241 = vunpack.c.l.b16 %v41
    %v242 = vunpack.c.l.b16 %v42
    %v243 = vunpack.c.l.b16 %v43
    %v244 = vunpack.c.l.b16 %v44
    %v245 = vunpack.c.l.b16 %v45
    %v246 = vunpack.c.l.b16 %v46
    %v247 = vunpack.c.l.b16 %v47
    %v248 = vunpack.c.l.b16 %v48
    %v249 = vunpack.c.l.b16 %v49
    %v250 = vunpack.c.l.b16 %v50
    %v251 = vunpack.c.l.b16 %v51
    %v252 = vunpack.c.l.b16 %v52
    %v253 = vunpack.c.l.b16 %v53
    %v254 = vunpack.c.l.b16 %v54
    %v255 = vunpack.c.l.b16 %v55
    %v256 = vunpack.c.l.b16 %v56
    %v257 = vunpack.c.l.b16 %v57
    %v258 = vunpack.c.l.b16 %v58
    %v259 = vunpack.c.l.b16 %v59
    %v260 = vunpack.c.l.b16 %v60
    %v261 = vunpack.c.l.b16 %v61
    %v262 = vunpack.c.l.b16 %v62
    %v263 = vunpack.c.l.b16 %v63
    %v264 = vunpack.c.l.b16 %v64
    %v265 = vunpack.c.l.b16 %v65
    %v266 = vunpack.c.l.b16 %v66
    %v267 = vunpack.c.l.b16 %v67
    %v268 = vunpack.c.l.b16 %v68
    %v269 = vpack.c.b16 %v238, %v237
    %v270 = vpack.c.b16 %v240, %v239
    %v271 = vpack.c.b16 %v242, %v241
    %v272 = vpack.c.b16 %v244, %v243
    %v273 = vpack.c.b16 %v246, %v245
    %v274 = vpack.c.b16 %v248, %v247
    %v275 = vpack.c.b16 %v250, %v249
    %v276 = vpack.c.b16 %v252, %v251
    %v277 = vpack.c.b16 %v254, %v253
    %v278 = vpack.c.b16 %v256, %v255
    %v279 = vpack.c.b16 %v258, %v257
    %v280 = vpack.c.b16 %v260, %v259
    %v281 = vpack.c.b16 %v262, %v261
    %v282 = vpack.c.b16 %v264, %v263
    %v283 = vpack.c.b16 %v266, %v265
    %v284 = vpack.c.b16 %v268, %v267
    %301 = vmatprep.subr.bf16.mxu0 0
    %302 = vmatpush1.bf16.msra.mxu0 %v269
    %303 = vmatprep.subr.bf16.mxu0 0
    %304 = vmatpush1.bf16.msra.mxu0 %v270
    %305 = vmatprep.subr.bf16.mxu0 0
    %306 = vmatpush1.bf16.msra.mxu0 %v271
    %307 = vmatprep.subr.bf16.mxu0 0
    %308 = vmatpush1.bf16.msra.mxu0 %v272
    %309 = vmatprep.subr.bf16.mxu0 0
    %310 = vmatpush1.bf16.msra.mxu0 %v273
    %311 = vmatprep.subr.bf16.mxu0 0
    %312 = vmatpush1.bf16.msra.mxu0 %v274
    %313 = vmatprep.subr.bf16.mxu0 0
    %314 = vmatpush1.bf16.msra.mxu0 %v275
    %315 = vmatprep.subr.bf16.mxu0 0
    %316 = vmatpush1.bf16.msra.mxu0 %v276
    %317 = vmatprep.subr.bf16.mxu0 0
    %318 = vmatpush1.bf16.msra.mxu0 %v277
    %319 = vmatprep.subr.bf16.mxu0 0
    %320 = vmatpush1.bf16.msra.mxu0 %v278
    %321 = vmatprep.subr.bf16.mxu0 0
    %322 = vmatpush1.bf16.msra.mxu0 %v279
    %323 = vmatprep.subr.bf16.mxu0 0
    %324 = vmatpush1.bf16.msra.mxu0 %v280
    %325 = vmatprep.subr.bf16.mxu0 0
    %326 = vmatpush1.bf16.msra.mxu0 %v281
    %327 = vmatprep.subr.bf16.mxu0 0
    %328 = vmatpush1.bf16.msra.mxu0 %v282
    %329 = vmatprep.subr.bf16.mxu0 0
    %330 = vmatpush1.bf16.msra.mxu0 %v283
    %331 = vmatprep.subr.bf16.mxu0 0
    %332 = vmatpush1.bf16.msra.mxu0 %v284
    %333 = vmatprep.mubr.bf16.mxu0 %v202
    %334 = vmatmul.mubr.bf16.gmra.mrb[0].mxu0 %v201
    %v335 = vpop.f32.mrb[0].mxu0
    %v336 = vadd.f32 0.0, %v335
    %v337 = vpop.f32.mrb[0].mxu0
    %v338 = vpop.f32.mrb[0].mxu0
    %v339 = vpop.f32.mrb[0].mxu0
    %340 = vdwg.mxu0
    %v341 = vpack.c.bf16 %v336, %v336
    %v342 = vld [vmem:[%s2] sm:$0xf]
    %v343 = vld [vmem:[%s2 + $0x4] sm:$0xf]
    %v344 = vld [vmem:[%s2 + $0x8] sm:$0xf]
    %v345 = vld [vmem:[%s2 + $0xc] sm:$0xf]
    %v346 = vld [vmem:[%s2 + $0x10] sm:$0xf]
    %v347 = vld [vmem:[%s2 + $0x14] sm:$0xf]
    %v348 = vld [vmem:[%s2 + $0x18] sm:$0xf]
    %v349 = vld [vmem:[%s2 + $0x1c] sm:$0xf]
    %v350 = vld [vmem:[%s2 + $0x20] sm:$0xf]
    %v351 = vld [vmem:[%s2 + $0x24] sm:$0xf]
    %v352 = vld [vmem:[%s2 + $0x28] sm:$0xf]
    %v353 = vld [vmem:[%s2 + $0x2c] sm:$0xf]
    %v354 = vld [vmem:[%s2 + $0x30] sm:$0xf]
    %v355 = vld [vmem:[%s2 + $0x34] sm:$0xf]
    %v356 = vld [vmem:[%s2 + $0x38] sm:$0xf]
    %v357 = vld [vmem:[%s2 + $0x3c] sm:$0xf]
    %v374 = vunpack.c.l.b16 %v342
    %v375 = vunpack.c.l.b16 %v343
    %v376 = vunpack.c.l.b16 %v344
    %v377 = vunpack.c.l.b16 %v345
    %v378 = vunpack.c.l.b16 %v346
    %v379 = vunpack.c.l.b16 %v347
    %v380 = vunpack.c.l.b16 %v348
    %v381 = vunpack.c.l.b16 %v349
    %v382 = vunpack.c.l.b16 %v350
    %v383 = vunpack.c.l.b16 %v351
    %v384 = vunpack.c.l.b16 %v352
    %v385 = vunpack.c.l.b16 %v353
    %v386 = vunpack.c.l.b16 %v354
    %v387 = vunpack.c.l.b16 %v355
    %v388 = vunpack.c.l.b16 %v356
    %v389 = vunpack.c.l.b16 %v357
    %v390 = vpack.c.b16 %v375, %v374
    %v391 = vpack.c.b16 %v377, %v376
    %v392 = vpack.c.b16 %v379, %v378
    %v393 = vpack.c.b16 %v381, %v380
    %v394 = vpack.c.b16 %v383, %v382
    %v395 = vpack.c.b16 %v385, %v384
    %v396 = vpack.c.b16 %v387, %v386
    %v397 = vpack.c.b16 %v389, %v388
    %406 = vmatprep.subr.bf16.mxu0 0
    %407 = vmatpush1.bf16.msra.mxu0 %v390
    %408 = vmatprep.subr.bf16.mxu0 0
    %409 = vmatpush1.bf16.msra.mxu0 %v391
    %410 = vmatprep.subr.bf16.mxu0 0
    %411 = vmatpush1.bf16.msra.mxu0 %v392
    %412 = vmatprep.subr.bf16.mxu0 0
    %413 = vmatpush1.bf16.msra.mxu0 %v393
    %414 = vmatprep.subr.bf16.mxu0 0
    %415 = vmatpush1.bf16.msra.mxu0 %v394
    %416 = vmatprep.subr.bf16.mxu0 0
    %417 = vmatpush1.bf16.msra.mxu0 %v395
    %418 = vmatprep.subr.bf16.mxu0 0
    %419 = vmatpush1.bf16.msra.mxu0 %v396
    %420 = vmatprep.subr.bf16.mxu0 0
    %421 = vmatpush1.bf16.msra.mxu0 %v397
    %422 = vmatprep.subr.bf16.mxu0 0
    %423 = vmatpush1.bf16.msra.mxu0 0
    %424 = vmatprep.subr.bf16.mxu0 0
    %425 = vmatpush1.bf16.msra.mxu0 0
    %426 = vmatprep.subr.bf16.mxu0 0
    %427 = vmatpush1.bf16.msra.mxu0 0
    %428 = vmatprep.subr.bf16.mxu0 0
    %429 = vmatpush1.bf16.msra.mxu0 0
    %430 = vmatprep.subr.bf16.mxu0 0
    %431 = vmatpush1.bf16.msra.mxu0 0
    %432 = vmatprep.subr.bf16.mxu0 0
    %433 = vmatpush1.bf16.msra.mxu0 0
    %434 = vmatprep.subr.bf16.mxu0 0
    %435 = vmatpush1.bf16.msra.mxu0 0
    %436 = vmatprep.subr.bf16.mxu0 0
    %437 = vmatpush1.bf16.msra.mxu0 0
    %438 = vmatprep.mubr.bf16.mxu0 0
    %439 = vmatmul.mubr.bf16.gmra.mrb[0].mxu0 %v341
    %v440 = vpop.f32.mrb[0].mxu0
    %v441 = vadd.f32 0.0, %v440
    %v442 = vpop.f32.mrb[0].mxu0
    %v443 = vpop.f32.mrb[0].mxu0
    %v444 = vpop.f32.mrb[0].mxu0
    %445 = vdwg.mxu0
    %v446 = vadd.f32 %v69, %v441
    %v447 = vld [vmem:[%s0] sm:$0x5]
    %v448 = vld [vmem:[%s0 + $0x4] sm:$0x5]
    %v449 = vld [vmem:[%s0 + $0x8] sm:$0x5]
    %v450 = vld [vmem:[%s0 + $0xc] sm:$0x5]
    %v451 = vld [vmem:[%s0 + $0x10] sm:$0x5]
    %v452 = vld [vmem:[%s0 + $0x14] sm:$0x5]
    %v453 = vld [vmem:[%s0 + $0x18] sm:$0x5]
    %v454 = vld [vmem:[%s0 + $0x1c] sm:$0x5]
    %v464 = vunpack.c.l.s4 1983009808
    %v465 = vunpack.c.0.s8 %v464
    %v466 = vlaneseq
    %v467 = vshrl.u32 %v466, 7
    %v468 = vsub.s32 %v465, %v467
    %v469 = vrot.slane %v447, %v468
    %v470 = vcombine.high %v469, %v469
    %v472 = vunpack.c.l.s4 1983009808
    %v473 = vunpack.c.0.s8 %v472
    %v474 = vlaneseq
    %v475 = vshrl.u32 %v474, 7
    %v476 = vsub.s32 %v473, %v475
    %v477 = vrot.slane %v448, %v476
    %v478 = vcombine.high %v477, %v477
    %v480 = vunpack.c.l.s4 1983009808
    %v481 = vunpack.c.0.s8 %v480
    %v482 = vlaneseq
    %v483 = vshrl.u32 %v482, 7
    %v484 = vsub.s32 %v481, %v483
    %v485 = vrot.slane %v449, %v484
    %v486 = vcombine.high %v485, %v485
    %v488 = vunpack.c.l.s4 1983009808
    %v489 = vunpack.c.0.s8 %v488
    %v490 = vlaneseq
    %v491 = vshrl.u32 %v490, 7
    %v492 = vsub.s32 %v489, %v491
    %v493 = vrot.slane %v450, %v492
    %v494 = vcombine.high %v493, %v493
    %v496 = vunpack.c.l.s4 1983009808
    %v497 = vunpack.c.0.s8 %v496
    %v498 = vlaneseq
    %v499 = vshrl.u32 %v498, 7
    %v500 = vsub.s32 %v497, %v499
    %v501 = vrot.slane %v451, %v500
    %v502 = vcombine.high %v501, %v501
    %v504 = vunpack.c.l.s4 1983009808
    %v505 = vunpack.c.0.s8 %v504
    %v506 = vlaneseq
    %v507 = vshrl.u32 %v506, 7
    %v508 = vsub.s32 %v505, %v507
    %v509 = vrot.slane %v452, %v508
    %v510 = vcombine.high %v509, %v509
    %v512 = vunpack.c.l.s4 1983009808
    %v513 = vunpack.c.0.s8 %v512
    %v514 = vlaneseq
    %v515 = vshrl.u32 %v514, 7
    %v516 = vsub.s32 %v513, %v515
    %v517 = vrot.slane %v453, %v516
    %v518 = vcombine.high %v517, %v517
    %v520 = vunpack.c.l.s4 1983009808
    %v521 = vunpack.c.0.s8 %v520
    %v522 = vlaneseq
    %v523 = vshrl.u32 %v522, 7
    %v524 = vsub.s32 %v521, %v523
    %v525 = vrot.slane %v454, %v524
    %v526 = vcombine.high %v525, %v525
    %v527 = vunpack.c.l.b16 %v469
    %v528 = vunpack.c.l.b16 %v470
    %v529 = vunpack.c.l.b16 %v477
    %v530 = vunpack.c.l.b16 %v478
    %v531 = vunpack.c.l.b16 %v485
    %v532 = vunpack.c.l.b16 %v486
    %v533 = vunpack.c.l.b16 %v493
    %v534 = vunpack.c.l.b16 %v494
    %v535 = vunpack.c.l.b16 %v501
    %v536 = vunpack.c.l.b16 %v502
    %v537 = vunpack.c.l.b16 %v509
    %v538 = vunpack.c.l.b16 %v510
    %v539 = vunpack.c.l.b16 %v517
    %v540 = vunpack.c.l.b16 %v518
    %v541 = vunpack.c.l.b16 %v525
    %v542 = vunpack.c.l.b16 %v526
    %v543 = vrot.slane %v527, 1
    %v544 = vsel %vm167, %v529, %v543
    %v545 = vrot.slane %v531, 7
    %v546 = vsel %vm170, %v545, %v544
    %v547 = vrot.slane %v533, 6
    %v548 = vsel %vm173, %v547, %v546
    %v549 = vrot.slane %v535, 5
    %v550 = vsel %vm176, %v549, %v548
    %v551 = vrot.slane %v537, 4
    %v552 = vsel %vm179, %v551, %v550
    %v553 = vrot.slane %v539, 3
    %v554 = vsel %vm182, %v553, %v552
    %v555 = vrot.slane %v541, 2
    %v556 = vsel %vm185, %v555, %v554
    %v557 = vrot.slane %v528, 1
    %v558 = vsel %vm167, %v530, %v557
    %v559 = vrot.slane %v532, 7
    %v560 = vsel %vm170, %v559, %v558
    %v561 = vrot.slane %v534, 6
    %v562 = vsel %vm173, %v561, %v560
    %v563 = vrot.slane %v536, 5
    %v564 = vsel %vm176, %v563, %v562
    %v565 = vrot.slane %v538, 4
    %v566 = vsel %vm179, %v565, %v564
    %v567 = vrot.slane %v540, 3
    %v568 = vsel %vm182, %v567, %v566
    %v569 = vrot.slane %v542, 2
    %v570 = vsel %vm185, %v569, %v568
    %v571 = vpack.c.b16 %v556, %v556
    %v572 = vpack.c.b16 %v570, %v570
    %575 = vmatprep.subr.bf16.mxu0 0
    %576 = vmatpush1.bf16.msra.mxu0 %v269
    %577 = vmatprep.subr.bf16.mxu0 0
    %578 = vmatpush1.bf16.msra.mxu0 %v270
    %579 = vmatprep.subr.bf16.mxu0 0
    %580 = vmatpush1.bf16.msra.mxu0 %v271
    %581 = vmatprep.subr.bf16.mxu0 0
    %582 = vmatpush1.bf16.msra.mxu0 %v272
    %583 = vmatprep.subr.bf16.mxu0 0
    %584 = vmatpush1.bf16.msra.mxu0 %v273
    %585 = vmatprep.subr.bf16.mxu0 0
    %586 = vmatpush1.bf16.msra.mxu0 %v274
    %587 = vmatprep.subr.bf16.mxu0 0
    %588 = vmatpush1.bf16.msra.mxu0 %v275
    %589 = vmatprep.subr.bf16.mxu0 0
    %590 = vmatpush1.bf16.msra.mxu0 %v276
    %591 = vmatprep.subr.bf16.mxu0 0
    %592 = vmatpush1.bf16.msra.mxu0 %v277
    %593 = vmatprep.subr.bf16.mxu0 0
    %594 = vmatpush1.bf16.msra.mxu0 %v278
    %595 = vmatprep.subr.bf16.mxu0 0
    %596 = vmatpush1.bf16.msra.mxu0 %v279
    %597 = vmatprep.subr.bf16.mxu0 0
    %598 = vmatpush1.bf16.msra.mxu0 %v280
    %599 = vmatprep.subr.bf16.mxu0 0
    %600 = vmatpush1.bf16.msra.mxu0 %v281
    %601 = vmatprep.subr.bf16.mxu0 0
    %602 = vmatpush1.bf16.msra.mxu0 %v282
    %603 = vmatprep.subr.bf16.mxu0 0
    %604 = vmatpush1.bf16.msra.mxu0 %v283
    %605 = vmatprep.subr.bf16.mxu0 0
    %606 = vmatpush1.bf16.msra.mxu0 %v284
    %607 = vmatprep.mubr.bf16.mxu0 %v572
    %608 = vmatmul.mubr.bf16.gmra.mrb[0].mxu0 %v571
    %v609 = vpop.f32.mrb[0].mxu0
    %v610 = vadd.f32 0.0, %v609
    %v611 = vpop.f32.mrb[0].mxu0
    %v612 = vpop.f32.mrb[0].mxu0
    %v613 = vpop.f32.mrb[0].mxu0
    %614 = vdwg.mxu0
    %v615 = vpack.c.bf16 %v610, %v610
    %s616 = scalar_lea.vmem %s2, 64
    %v617 = vld [vmem:[%s616] sm:$0xf]
    %v618 = vld [vmem:[%s616 + $0x4] sm:$0xf]
    %v619 = vld [vmem:[%s616 + $0x8] sm:$0xf]
    %v620 = vld [vmem:[%s616 + $0xc] sm:$0xf]
    %v621 = vld [vmem:[%s616 + $0x10] sm:$0xf]
    %v622 = vld [vmem:[%s616 + $0x14] sm:$0xf]
    %v623 = vld [vmem:[%s616 + $0x18] sm:$0xf]
    %v624 = vld [vmem:[%s616 + $0x1c] sm:$0xf]
    %v625 = vld [vmem:[%s616 + $0x20] sm:$0xf]
    %v626 = vld [vmem:[%s616 + $0x24] sm:$0xf]
    %v627 = vld [vmem:[%s616 + $0x28] sm:$0xf]
    %v628 = vld [vmem:[%s616 + $0x2c] sm:$0xf]
    %v629 = vld [vmem:[%s616 + $0x30] sm:$0xf]
    %v630 = vld [vmem:[%s616 + $0x34] sm:$0xf]
    %v631 = vld [vmem:[%s616 + $0x38] sm:$0xf]
    %v632 = vld [vmem:[%s616 + $0x3c] sm:$0xf]
    %v649 = vunpack.c.l.b16 %v617
    %v650 = vunpack.c.l.b16 %v618
    %v651 = vunpack.c.l.b16 %v619
    %v652 = vunpack.c.l.b16 %v620
    %v653 = vunpack.c.l.b16 %v621
    %v654 = vunpack.c.l.b16 %v622
    %v655 = vunpack.c.l.b16 %v623
    %v656 = vunpack.c.l.b16 %v624
    %v657 = vunpack.c.l.b16 %v625
    %v658 = vunpack.c.l.b16 %v626
    %v659 = vunpack.c.l.b16 %v627
    %v660 = vunpack.c.l.b16 %v628
    %v661 = vunpack.c.l.b16 %v629
    %v662 = vunpack.c.l.b16 %v630
    %v663 = vunpack.c.l.b16 %v631
    %v664 = vunpack.c.l.b16 %v632
    %v665 = vpack.c.b16 %v650, %v649
    %v666 = vpack.c.b16 %v652, %v651
    %v667 = vpack.c.b16 %v654, %v653
    %v668 = vpack.c.b16 %v656, %v655
    %v669 = vpack.c.b16 %v658, %v657
    %v670 = vpack.c.b16 %v660, %v659
    %v671 = vpack.c.b16 %v662, %v661
    %v672 = vpack.c.b16 %v664, %v663
    %681 = vmatprep.subr.bf16.mxu0 0
    %682 = vmatpush1.bf16.msra.mxu0 %v665
    %683 = vmatprep.subr.bf16.mxu0 0
    %684 = vmatpush1.bf16.msra.mxu0 %v666
    %685 = vmatprep.subr.bf16.mxu0 0
    %686 = vmatpush1.bf16.msra.mxu0 %v667
    %687 = vmatprep.subr.bf16.mxu0 0
    %688 = vmatpush1.bf16.msra.mxu0 %v668
    %689 = vmatprep.subr.bf16.mxu0 0
    %690 = vmatpush1.bf16.msra.mxu0 %v669
    %691 = vmatprep.subr.bf16.mxu0 0
    %692 = vmatpush1.bf16.msra.mxu0 %v670
    %693 = vmatprep.subr.bf16.mxu0 0
    %694 = vmatpush1.bf16.msra.mxu0 %v671
    %695 = vmatprep.subr.bf16.mxu0 0
    %696 = vmatpush1.bf16.msra.mxu0 %v672
    %697 = vmatprep.subr.bf16.mxu0 0
    %698 = vmatpush1.bf16.msra.mxu0 0
    %699 = vmatprep.subr.bf16.mxu0 0
    %700 = vmatpush1.bf16.msra.mxu0 0
    %701 = vmatprep.subr.bf16.mxu0 0
    %702 = vmatpush1.bf16.msra.mxu0 0
    %703 = vmatprep.subr.bf16.mxu0 0
    %704 = vmatpush1.bf16.msra.mxu0 0
    %705 = vmatprep.subr.bf16.mxu0 0
    %706 = vmatpush1.bf16.msra.mxu0 0
    %707 = vmatprep.subr.bf16.mxu0 0
    %708 = vmatpush1.bf16.msra.mxu0 0
    %709 = vmatprep.subr.bf16.mxu0 0
    %710 = vmatpush1.bf16.msra.mxu0 0
    %711 = vmatprep.subr.bf16.mxu0 0
    %712 = vmatpush1.bf16.msra.mxu0 0
    %713 = vmatprep.mubr.bf16.mxu0 0
    %714 = vmatmul.mubr.bf16.gmra.mrb[0].mxu0 %v615
    %v715 = vpop.f32.mrb[0].mxu0
    %v716 = vadd.f32 0.0, %v715
    %v717 = vpop.f32.mrb[0].mxu0
    %v718 = vpop.f32.mrb[0].mxu0
    %v719 = vpop.f32.mrb[0].mxu0
    %720 = vdwg.mxu0
    %v721 = vadd.f32 %v446, %v716
    %v722 = vld [vmem:[%s0] sm:$0xa]
    %v723 = vld [vmem:[%s0 + $0x4] sm:$0xa]
    %v724 = vld [vmem:[%s0 + $0x8] sm:$0xa]
    %v725 = vld [vmem:[%s0 + $0xc] sm:$0xa]
    %v726 = vld [vmem:[%s0 + $0x10] sm:$0xa]
    %v727 = vld [vmem:[%s0 + $0x14] sm:$0xa]
    %v728 = vld [vmem:[%s0 + $0x18] sm:$0xa]
    %v729 = vld [vmem:[%s0 + $0x1c] sm:$0xa]
    %v739 = vunpack.c.l.s4 1983009808
    %v740 = vunpack.c.0.s8 %v739
    %v741 = vlaneseq
    %v742 = vshrl.u32 %v741, 7
    %v743 = vsub.s32 %v740, %v742
    %v744 = vrot.slane %v722, %v743
    %v745 = vcombine.high %v744, %v744
    %v747 = vunpack.c.l.s4 1983009808
    %v748 = vunpack.c.0.s8 %v747
    %v749 = vlaneseq
    %v750 = vshrl.u32 %v749, 7
    %v751 = vsub.s32 %v748, %v750
    %v752 = vrot.slane %v723, %v751
    %v753 = vcombine.high %v752, %v752
    %v755 = vunpack.c.l.s4 1983009808
    %v756 = vunpack.c.0.s8 %v755
    %v757 = vlaneseq
    %v758 = vshrl.u32 %v757, 7
    %v759 = vsub.s32 %v756, %v758
    %v760 = vrot.slane %v724, %v759
    %v761 = vcombine.high %v760, %v760
    %v763 = vunpack.c.l.s4 1983009808
    %v764 = vunpack.c.0.s8 %v763
    %v765 = vlaneseq
    %v766 = vshrl.u32 %v765, 7
    %v767 = vsub.s32 %v764, %v766
    %v768 = vrot.slane %v725, %v767
    %v769 = vcombine.high %v768, %v768
    %v771 = vunpack.c.l.s4 1983009808
    %v772 = vunpack.c.0.s8 %v771
    %v773 = vlaneseq
    %v774 = vshrl.u32 %v773, 7
    %v775 = vsub.s32 %v772, %v774
    %v776 = vrot.slane %v726, %v775
    %v777 = vcombine.high %v776, %v776
    %v779 = vunpack.c.l.s4 1983009808
    %v780 = vunpack.c.0.s8 %v779
    %v781 = vlaneseq
    %v782 = vshrl.u32 %v781, 7
    %v783 = vsub.s32 %v780, %v782
    %v784 = vrot.slane %v727, %v783
    %v785 = vcombine.high %v784, %v784
    %v787 = vunpack.c.l.s4 1983009808
    %v788 = vunpack.c.0.s8 %v787
    %v789 = vlaneseq
    %v790 = vshrl.u32 %v789, 7
    %v791 = vsub.s32 %v788, %v790
    %v792 = vrot.slane %v728, %v791
    %v793 = vcombine.high %v792, %v792
    %v795 = vunpack.c.l.s4 1983009808
    %v796 = vunpack.c.0.s8 %v795
    %v797 = vlaneseq
    %v798 = vshrl.u32 %v797, 7
    %v799 = vsub.s32 %v796, %v798
    %v800 = vrot.slane %v729, %v799
    %v801 = vcombine.high %v800, %v800
    %v802 = vunpack.c.l.b16 %v744
    %v803 = vunpack.c.l.b16 %v745
    %v804 = vunpack.c.l.b16 %v752
    %v805 = vunpack.c.l.b16 %v753
    %v806 = vunpack.c.l.b16 %v760
    %v807 = vunpack.c.l.b16 %v761
    %v808 = vunpack.c.l.b16 %v768
    %v809 = vunpack.c.l.b16 %v769
    %v810 = vunpack.c.l.b16 %v776
    %v811 = vunpack.c.l.b16 %v777
    %v812 = vunpack.c.l.b16 %v784
    %v813 = vunpack.c.l.b16 %v785
    %v814 = vunpack.c.l.b16 %v792
    %v815 = vunpack.c.l.b16 %v793
    %v816 = vunpack.c.l.b16 %v800
    %v817 = vunpack.c.l.b16 %v801
    %v818 = vrot.slane %v802, 2
    %v819 = vrot.slane %v804, 1
    %v820 = vsel %vm167, %v819, %v818
    %v821 = vsel %vm170, %v806, %v820
    %v822 = vrot.slane %v808, 7
    %v823 = vsel %vm173, %v822, %v821
    %v824 = vrot.slane %v810, 6
    %v825 = vsel %vm176, %v824, %v823
    %v826 = vrot.slane %v812, 5
    %v827 = vsel %vm179, %v826, %v825
    %v828 = vrot.slane %v814, 4
    %v829 = vsel %vm182, %v828, %v827
    %v830 = vrot.slane %v816, 3
    %v831 = vsel %vm185, %v830, %v829
    %v832 = vrot.slane %v803, 2
    %v833 = vrot.slane %v805, 1
    %v834 = vsel %vm167, %v833, %v832
    %v835 = vsel %vm170, %v807, %v834
    %v836 = vrot.slane %v809, 7
    %v837 = vsel %vm173, %v836, %v835
    %v838 = vrot.slane %v811, 6
    %v839 = vsel %vm176, %v838, %v837
    %v840 = vrot.slane %v813, 5
    %v841 = vsel %vm179, %v840, %v839
    %v842 = vrot.slane %v815, 4
    %v843 = vsel %vm182, %v842, %v841
    %v844 = vrot.slane %v817, 3
    %v845 = vsel %vm185, %v844, %v843
    %v846 = vpack.c.b16 %v831, %v831
    %v847 = vpack.c.b16 %v845, %v845
    %850 = vmatprep.subr.bf16.mxu0 0
    %851 = vmatpush1.bf16.msra.mxu0 %v269
    %852 = vmatprep.subr.bf16.mxu0 0
    %853 = vmatpush1.bf16.msra.mxu0 %v270
    %854 = vmatprep.subr.bf16.mxu0 0
    %855 = vmatpush1.bf16.msra.mxu0 %v271
    %856 = vmatprep.subr.bf16.mxu0 0
    %857 = vmatpush1.bf16.msra.mxu0 %v272
    %858 = vmatprep.subr.bf16.mxu0 0
    %859 = vmatpush1.bf16.msra.mxu0 %v273
    %860 = vmatprep.subr.bf16.mxu0 0
    %861 = vmatpush1.bf16.msra.mxu0 %v274
    %862 = vmatprep.subr.bf16.mxu0 0
    %863 = vmatpush1.bf16.msra.mxu0 %v275
    %864 = vmatprep.subr.bf16.mxu0 0
    %865 = vmatpush1.bf16.msra.mxu0 %v276
    %866 = vmatprep.subr.bf16.mxu0 0
    %867 = vmatpush1.bf16.msra.mxu0 %v277
    %868 = vmatprep.subr.bf16.mxu0 0
    %869 = vmatpush1.bf16.msra.mxu0 %v278
    %870 = vmatprep.subr.bf16.mxu0 0
    %871 = vmatpush1.bf16.msra.mxu0 %v279
    %872 = vmatprep.subr.bf16.mxu0 0
    %873 = vmatpush1.bf16.msra.mxu0 %v280
    %874 = vmatprep.subr.bf16.mxu0 0
    %875 = vmatpush1.bf16.msra.mxu0 %v281
    %876 = vmatprep.subr.bf16.mxu0 0
    %877 = vmatpush1.bf16.msra.mxu0 %v282
    %878 = vmatprep.subr.bf16.mxu0 0
    %879 = vmatpush1.bf16.msra.mxu0 %v283
    %880 = vmatprep.subr.bf16.mxu0 0
    %881 = vmatpush1.bf16.msra.mxu0 %v284
    %882 = vmatprep.mubr.bf16.mxu0 %v847
    %883 = vmatmul.mubr.bf16.gmra.mrb[0].mxu0 %v846
    %v884 = vpop.f32.mrb[0].mxu0
    %v885 = vadd.f32 0.0, %v884
    %v886 = vpop.f32.mrb[0].mxu0
    %v887 = vpop.f32.mrb[0].mxu0
    %v888 = vpop.f32.mrb[0].mxu0
    %889 = vdwg.mxu0
    %v890 = vpack.c.bf16 %v885, %v885
    %s891 = scalar_lea.vmem %s2, 128
    %v892 = vld [vmem:[%s891] sm:$0xf]
    %v893 = vld [vmem:[%s891 + $0x4] sm:$0xf]
    %v894 = vld [vmem:[%s891 + $0x8] sm:$0xf]
    %v895 = vld [vmem:[%s891 + $0xc] sm:$0xf]
    %v896 = vld [vmem:[%s891 + $0x10] sm:$0xf]
    %v897 = vld [vmem:[%s891 + $0x14] sm:$0xf]
    %v898 = vld [vmem:[%s891 + $0x18] sm:$0xf]
    %v899 = vld [vmem:[%s891 + $0x1c] sm:$0xf]
    %v900 = vld [vmem:[%s891 + $0x20] sm:$0xf]
    %v901 = vld [vmem:[%s891 + $0x24] sm:$0xf]
    %v902 = vld [vmem:[%s891 + $0x28] sm:$0xf]
    %v903 = vld [vmem:[%s891 + $0x2c] sm:$0xf]
    %v904 = vld [vmem:[%s891 + $0x30] sm:$0xf]
    %v905 = vld [vmem:[%s891 + $0x34] sm:$0xf]
    %v906 = vld [vmem:[%s891 + $0x38] sm:$0xf]
    %v907 = vld [vmem:[%s891 + $0x3c] sm:$0xf]
    %v924 = vunpack.c.l.b16 %v892
    %v925 = vunpack.c.l.b16 %v893
    %v926 = vunpack.c.l.b16 %v894
    %v927 = vunpack.c.l.b16 %v895
    %v928 = vunpack.c.l.b16 %v896
    %v929 = vunpack.c.l.b16 %v897
    %v930 = vunpack.c.l.b16 %v898
    %v931 = vunpack.c.l.b16 %v899
    %v932 = vunpack.c.l.b16 %v900
    %v933 = vunpack.c.l.b16 %v901
    %v934 = vunpack.c.l.b16 %v902
    %v935 = vunpack.c.l.b16 %v903
    %v936 = vunpack.c.l.b16 %v904
    %v937 = vunpack.c.l.b16 %v905
    %v938 = vunpack.c.l.b16 %v906
    %v939 = vunpack.c.l.b16 %v907
    %v940 = vpack.c.b16 %v925, %v924
    %v941 = vpack.c.b16 %v927, %v926
    %v942 = vpack.c.b16 %v929, %v928
    %v943 = vpack.c.b16 %v931, %v930
    %v944 = vpack.c.b16 %v933, %v932
    %v945 = vpack.c.b16 %v935, %v934
    %v946 = vpack.c.b16 %v937, %v936
    %v947 = vpack.c.b16 %v939, %v938
    %956 = vmatprep.subr.bf16.mxu0 0
    %957 = vmatpush1.bf16.msra.mxu0 %v940
    %958 = vmatprep.subr.bf16.mxu0 0
    %959 = vmatpush1.bf16.msra.mxu0 %v941
    %960 = vmatprep.subr.bf16.mxu0 0
    %961 = vmatpush1.bf16.msra.mxu0 %v942
    %962 = vmatprep.subr.bf16.mxu0 0
    %963 = vmatpush1.bf16.msra.mxu0 %v943
    %964 = vmatprep.subr.bf16.mxu0 0
    %965 = vmatpush1.bf16.msra.mxu0 %v944
    %966 = vmatprep.subr.bf16.mxu0 0
    %967 = vmatpush1.bf16.msra.mxu0 %v945
    %968 = vmatprep.subr.bf16.mxu0 0
    %969 = vmatpush1.bf16.msra.mxu0 %v946
    %970 = vmatprep.subr.bf16.mxu0 0
    %971 = vmatpush1.bf16.msra.mxu0 %v947
    %972 = vmatprep.subr.bf16.mxu0 0
    %973 = vmatpush1.bf16.msra.mxu0 0
    %974 = vmatprep.subr.bf16.mxu0 0
    %975 = vmatpush1.bf16.msra.mxu0 0
    %976 = vmatprep.subr.bf16.mxu0 0
    %977 = vmatpush1.bf16.msra.mxu0 0
    %978 = vmatprep.subr.bf16.mxu0 0
    %979 = vmatpush1.bf16.msra.mxu0 0
    %980 = vmatprep.subr.bf16.mxu0 0
    %981 = vmatpush1.bf16.msra.mxu0 0
    %982 = vmatprep.subr.bf16.mxu0 0
    %983 = vmatpush1.bf16.msra.mxu0 0
    %984 = vmatprep.subr.bf16.mxu0 0
    %985 = vmatpush1.bf16.msra.mxu0 0
    %986 = vmatprep.subr.bf16.mxu0 0
    %987 = vmatpush1.bf16.msra.mxu0 0
    %988 = vmatprep.mubr.bf16.mxu0 0
    %989 = vmatmul.mubr.bf16.gmra.mrb[0].mxu0 %v890
    %v990 = vpop.f32.mrb[0].mxu0
    %v991 = vadd.f32 0.0, %v990
    %v992 = vpop.f32.mrb[0].mxu0
    %v993 = vpop.f32.mrb[0].mxu0
    %v994 = vpop.f32.mrb[0].mxu0
    %995 = vdwg.mxu0
    %v996 = vadd.f32 %v721, %v991
    %v997 = vld [vmem:[%s0] sm:$0xa]
    %v998 = vld [vmem:[%s0 + $0x4] sm:$0xa]
    %v999 = vld [vmem:[%s0 + $0x8] sm:$0xa]
    %v1000 = vld [vmem:[%s0 + $0xc] sm:$0xa]
    %v1001 = vld [vmem:[%s0 + $0x10] sm:$0xa]
    %v1002 = vld [vmem:[%s0 + $0x14] sm:$0xa]
    %v1003 = vld [vmem:[%s0 + $0x18] sm:$0xa]
    %v1004 = vld [vmem:[%s0 + $0x1c] sm:$0xa]
    %v1014 = vunpack.c.l.s4 1983009808
    %v1015 = vunpack.c.0.s8 %v1014
    %v1016 = vlaneseq
    %v1017 = vshrl.u32 %v1016, 7
    %v1018 = vsub.s32 %v1015, %v1017
    %v1019 = vrot.slane %v997, %v1018
    %v1020 = vcombine.high %v1019, %v1019
    %v1022 = vunpack.c.l.s4 1983009808
    %v1023 = vunpack.c.0.s8 %v1022
    %v1024 = vlaneseq
    %v1025 = vshrl.u32 %v1024, 7
    %v1026 = vsub.s32 %v1023, %v1025
    %v1027 = vrot.slane %v998, %v1026
    %v1028 = vcombine.high %v1027, %v1027
    %v1030 = vunpack.c.l.s4 1983009808
    %v1031 = vunpack.c.0.s8 %v1030
    %v1032 = vlaneseq
    %v1033 = vshrl.u32 %v1032, 7
    %v1034 = vsub.s32 %v1031, %v1033
    %v1035 = vrot.slane %v999, %v1034
    %v1036 = vcombine.high %v1035, %v1035
    %v1038 = vunpack.c.l.s4 1983009808
    %v1039 = vunpack.c.0.s8 %v1038
    %v1040 = vlaneseq
    %v1041 = vshrl.u32 %v1040, 7
    %v1042 = vsub.s32 %v1039, %v1041
    %v1043 = vrot.slane %v1000, %v1042
    %v1044 = vcombine.high %v1043, %v1043
    %v1046 = vunpack.c.l.s4 1983009808
    %v1047 = vunpack.c.0.s8 %v1046
    %v1048 = vlaneseq
    %v1049 = vshrl.u32 %v1048, 7
    %v1050 = vsub.s32 %v1047, %v1049
    %v1051 = vrot.slane %v1001, %v1050
    %v1052 = vcombine.high %v1051, %v1051
    %v1054 = vunpack.c.l.s4 1983009808
    %v1055 = vunpack.c.0.s8 %v1054
    %v1056 = vlaneseq
    %v1057 = vshrl.u32 %v1056, 7
    %v1058 = vsub.s32 %v1055, %v1057
    %v1059 = vrot.slane %v1002, %v1058
    %v1060 = vcombine.high %v1059, %v1059
    %v1062 = vunpack.c.l.s4 1983009808
    %v1063 = vunpack.c.0.s8 %v1062
    %v1064 = vlaneseq
    %v1065 = vshrl.u32 %v1064, 7
    %v1066 = vsub.s32 %v1063, %v1065
    %v1067 = vrot.slane %v1003, %v1066
    %v1068 = vcombine.high %v1067, %v1067
    %v1070 = vunpack.c.l.s4 1983009808
    %v1071 = vunpack.c.0.s8 %v1070
    %v1072 = vlaneseq
    %v1073 = vshrl.u32 %v1072, 7
    %v1074 = vsub.s32 %v1071, %v1073
    %v1075 = vrot.slane %v1004, %v1074
    %v1076 = vcombine.high %v1075, %v1075
    %v1077 = vunpack.c.l.b16 %v1019
    %v1078 = vunpack.c.l.b16 %v1020
    %v1079 = vunpack.c.l.b16 %v1027
    %v1080 = vunpack.c.l.b16 %v1028
    %v1081 = vunpack.c.l.b16 %v1035
    %v1082 = vunpack.c.l.b16 %v1036
    %v1083 = vunpack.c.l.b16 %v1043
    %v1084 = vunpack.c.l.b16 %v1044
    %v1085 = vunpack.c.l.b16 %v1051
    %v1086 = vunpack.c.l.b16 %v1052
    %v1087 = vunpack.c.l.b16 %v1059
    %v1088 = vunpack.c.l.b16 %v1060
    %v1089 = vunpack.c.l.b16 %v1067
    %v1090 = vunpack.c.l.b16 %v1068
    %v1091 = vunpack.c.l.b16 %v1075
    %v1092 = vunpack.c.l.b16 %v1076
    %v1093 = vrot.slane %v1077, 3
    %v1094 = vrot.slane %v1079, 2
    %v1095 = vsel %vm167, %v1094, %v1093
    %v1096 = vrot.slane %v1081, 1
    %v1097 = vsel %vm170, %v1096, %v1095
    %v1098 = vsel %vm173, %v1083, %v1097
    %v1099 = vrot.slane %v1085, 7
    %v1100 = vsel %vm176, %v1099, %v1098
    %v1101 = vrot.slane %v1087, 6
    %v1102 = vsel %vm179, %v1101, %v1100
    %v1103 = vrot.slane %v1089, 5
    %v1104 = vsel %vm182, %v1103, %v1102
    %v1105 = vrot.slane %v1091, 4
    %v1106 = vsel %vm185, %v1105, %v1104
    %v1107 = vrot.slane %v1078, 3
    %v1108 = vrot.slane %v1080, 2
    %v1109 = vsel %vm167, %v1108, %v1107
    %v1110 = vrot.slane %v1082, 1
    %v1111 = vsel %vm170, %v1110, %v1109
    %v1112 = vsel %vm173, %v1084, %v1111
    %v1113 = vrot.slane %v1086, 7
    %v1114 = vsel %vm176, %v1113, %v1112
    %v1115 = vrot.slane %v1088, 6
    %v1116 = vsel %vm179, %v1115, %v1114
    %v1117 = vrot.slane %v1090, 5
    %v1118 = vsel %vm182, %v1117, %v1116
    %v1119 = vrot.slane %v1092, 4
    %v1120 = vsel %vm185, %v1119, %v1118
    %v1121 = vpack.c.b16 %v1106, %v1106
    %v1122 = vpack.c.b16 %v1120, %v1120
    %1125 = vmatprep.subr.bf16.mxu0 0
    %1126 = vmatpush1.bf16.msra.mxu0 %v269
    %1127 = vmatprep.subr.bf16.mxu0 0
    %1128 = vmatpush1.bf16.msra.mxu0 %v270
    %1129 = vmatprep.subr.bf16.mxu0 0
    %1130 = vmatpush1.bf16.msra.mxu0 %v271
    %1131 = vmatprep.subr.bf16.mxu0 0
    %1132 = vmatpush1.bf16.msra.mxu0 %v272
    %1133 = vmatprep.subr.bf16.mxu0 0
    %1134 = vmatpush1.bf16.msra.mxu0 %v273
    %1135 = vmatprep.subr.bf16.mxu0 0
    %1136 = vmatpush1.bf16.msra.mxu0 %v274
    %1137 = vmatprep.subr.bf16.mxu0 0
    %1138 = vmatpush1.bf16.msra.mxu0 %v275
    %1139 = vmatprep.subr.bf16.mxu0 0
    %1140 = vmatpush1.bf16.msra.mxu0 %v276
    %1141 = vmatprep.subr.bf16.mxu0 0
    %1142 = vmatpush1.bf16.msra.mxu0 %v277
    %1143 = vmatprep.subr.bf16.mxu0 0
    %1144 = vmatpush1.bf16.msra.mxu0 %v278
    %1145 = vmatprep.subr.bf16.mxu0 0
    %1146 = vmatpush1.bf16.msra.mxu0 %v279
    %1147 = vmatprep.subr.bf16.mxu0 0
    %1148 = vmatpush1.bf16.msra.mxu0 %v280
    %1149 = vmatprep.subr.bf16.mxu0 0
    %1150 = vmatpush1.bf16.msra.mxu0 %v281
    %1151 = vmatprep.subr.bf16.mxu0 0
    %1152 = vmatpush1.bf16.msra.mxu0 %v282
    %1153 = vmatprep.subr.bf16.mxu0 0
    %1154 = vmatpush1.bf16.msra.mxu0 %v283
    %1155 = vmatprep.subr.bf16.mxu0 0
    %1156 = vmatpush1.bf16.msra.mxu0 %v284
    %1157 = vmatprep.mubr.bf16.mxu0 %v1122
    %1158 = vmatmul.mubr.bf16.gmra.mrb[0].mxu0 %v1121
    %v1159 = vpop.f32.mrb[0].mxu0
    %v1160 = vadd.f32 0.0, %v1159
    %v1161 = vpop.f32.mrb[0].mxu0
    %v1162 = vpop.f32.mrb[0].mxu0
    %v1163 = vpop.f32.mrb[0].mxu0
    %1164 = vdwg.mxu0
    %v1165 = vpack.c.bf16 %v1160, %v1160
    %s1166 = scalar_lea.vmem %s2, 192
    %v1167 = vld [vmem:[%s1166] sm:$0xf]
    %v1168 = vld [vmem:[%s1166 + $0x4] sm:$0xf]
    %v1169 = vld [vmem:[%s1166 + $0x8] sm:$0xf]
    %v1170 = vld [vmem:[%s1166 + $0xc] sm:$0xf]
    %v1171 = vld [vmem:[%s1166 + $0x10] sm:$0xf]
    %v1172 = vld [vmem:[%s1166 + $0x14] sm:$0xf]
    %v1173 = vld [vmem:[%s1166 + $0x18] sm:$0xf]
    %v1174 = vld [vmem:[%s1166 + $0x1c] sm:$0xf]
    %v1175 = vld [vmem:[%s1166 + $0x20] sm:$0xf]
    %v1176 = vld [vmem:[%s1166 + $0x24] sm:$0xf]
    %v1177 = vld [vmem:[%s1166 + $0x28] sm:$0xf]
    %v1178 = vld [vmem:[%s1166 + $0x2c] sm:$0xf]
    %v1179 = vld [vmem:[%s1166 + $0x30] sm:$0xf]
    %v1180 = vld [vmem:[%s1166 + $0x34] sm:$0xf]
    %v1181 = vld [vmem:[%s1166 + $0x38] sm:$0xf]
    %v1182 = vld [vmem:[%s1166 + $0x3c] sm:$0xf]
    %v1199 = vunpack.c.l.b16 %v1167
    %v1200 = vunpack.c.l.b16 %v1168
    %v1201 = vunpack.c.l.b16 %v1169
    %v1202 = vunpack.c.l.b16 %v1170
    %v1203 = vunpack.c.l.b16 %v1171
    %v1204 = vunpack.c.l.b16 %v1172
    %v1205 = vunpack.c.l.b16 %v1173
    %v1206 = vunpack.c.l.b16 %v1174
    %v1207 = vunpack.c.l.b16 %v1175
    %v1208 = vunpack.c.l.b16 %v1176
    %v1209 = vunpack.c.l.b16 %v1177
    %v1210 = vunpack.c.l.b16 %v1178
    %v1211 = vunpack.c.l.b16 %v1179
    %v1212 = vunpack.c.l.b16 %v1180
    %v1213 = vunpack.c.l.b16 %v1181
    %v1214 = vunpack.c.l.b16 %v1182
    %v1215 = vpack.c.b16 %v1200, %v1199
    %v1216 = vpack.c.b16 %v1202, %v1201
    %v1217 = vpack.c.b16 %v1204, %v1203
    %v1218 = vpack.c.b16 %v1206, %v1205
    %v1219 = vpack.c.b16 %v1208, %v1207
    %v1220 = vpack.c.b16 %v1210, %v1209
    %v1221 = vpack.c.b16 %v1212, %v1211
    %v1222 = vpack.c.b16 %v1214, %v1213
    %1231 = vmatprep.subr.bf16.mxu0 0
    %1232 = vmatpush1.bf16.msra.mxu0 %v1215
    %1233 = vmatprep.subr.bf16.mxu0 0
    %1234 = vmatpush1.bf16.msra.mxu0 %v1216
    %1235 = vmatprep.subr.bf16.mxu0 0
    %1236 = vmatpush1.bf16.msra.mxu0 %v1217
    %1237 = vmatprep.subr.bf16.mxu0 0
    %1238 = vmatpush1.bf16.msra.mxu0 %v1218
    %1239 = vmatprep.subr.bf16.mxu0 0
    %1240 = vmatpush1.bf16.msra.mxu0 %v1219
    %1241 = vmatprep.subr.bf16.mxu0 0
    %1242 = vmatpush1.bf16.msra.mxu0 %v1220
    %1243 = vmatprep.subr.bf16.mxu0 0
    %1244 = vmatpush1.bf16.msra.mxu0 %v1221
    %1245 = vmatprep.subr.bf16.mxu0 0
    %1246 = vmatpush1.bf16.msra.mxu0 %v1222
    %1247 = vmatprep.subr.bf16.mxu0 0
    %1248 = vmatpush1.bf16.msra.mxu0 0
    %1249 = vmatprep.subr.bf16.mxu0 0
    %1250 = vmatpush1.bf16.msra.mxu0 0
    %1251 = vmatprep.subr.bf16.mxu0 0
    %1252 = vmatpush1.bf16.msra.mxu0 0
    %1253 = vmatprep.subr.bf16.mxu0 0
    %1254 = vmatpush1.bf16.msra.mxu0 0
    %1255 = vmatprep.subr.bf16.mxu0 0
    %1256 = vmatpush1.bf16.msra.mxu0 0
    %1257 = vmatprep.subr.bf16.mxu0 0
    %1258 = vmatpush1.bf16.msra.mxu0 0
    %1259 = vmatprep.subr.bf16.mxu0 0
    %1260 = vmatpush1.bf16.msra.mxu0 0
    %1261 = vmatprep.subr.bf16.mxu0 0
    %1262 = vmatpush1.bf16.msra.mxu0 0
    %1263 = vmatprep.mubr.bf16.mxu0 0
    %1264 = vmatmul.mubr.bf16.gmra.mrb[0].mxu0 %v1165
    %v1265 = vpop.f32.mrb[0].mxu0
    %v1266 = vadd.f32 0.0, %v1265
    %v1267 = vpop.f32.mrb[0].mxu0
    %v1268 = vpop.f32.mrb[0].mxu0
    %v1269 = vpop.f32.mrb[0].mxu0
    %1270 = vdwg.mxu0
    %v1271 = vadd.f32 %v996, %v1266
    %1272 = vst [vmem:[#allocation2] sm:$0xff] %v1271
    // Predicated region
    $region26: #{gcp_forward.1} parent=1 // pred_check
      %p1273 = pneg %p32
    $region27: #{gcp_forward.1} parent=1 // pred_check_branch
      %1275 = sbr.rel (%p1273) target = $region29
    $region28: #{gcp_forward.1} parent=1 // pred_region
      %v1276 = vld [vmem:[%s3] sm:$0x1]
      %v1278 = vlaneseq
      %v1279 = vshrl.u32 %v1278, 7
      %v1280 = vsub.s32 0, %v1279
      %v1281 = vrot.slane %v1276, %v1280
      %v1283 = vadd.f32 %v1271, %v1281
      %v1284 = vmax.f32 %v1283, 0.0
      %1285 = vst [vmem:[%s4] sm:$0xff] %v1284
    $region29: #{gcp_forward.1} parent=1 // pred_fallthru
      _
    // Predicated region
    $region30: #{gcp_forward.1} parent=1 // pred_check
      _
    $region31: #{gcp_forward.1} parent=1 // pred_check_branch
      %1287 = sbr.rel (0) target = $region33
    $region32: #{gcp_forward.1} parent=1 // pred_region
      _
    $region33: #{gcp_forward.1} parent=1 // pred_fallthru
      _
    // Predicated region
    $region34: #{gcp_forward.1} parent=1 // pred_check
      _
    $region35: #{gcp_forward.1} parent=1 // pred_check_branch
      %1289 = sbr.rel (0) target = $region37
    $region36: #{gcp_forward.1} parent=1 // pred_region
      _
    $region37: #{gcp_forward.1} parent=1 // pred_fallthru
      _
    %1290 = vsyncpa [#allocation4], 1

</llo_original>
